<compile_context>
chip_gen: v6e
topology: v6e:2x2x1
jax: 0.10.0
libtpu: 0.0.40
codegen_flags: <defaults>
</compile_context>

<pallas_src>
import math
from functools import partial

import jax
import jax.numpy as jnp
from jax.experimental import pallas as pl
from jax.experimental.pallas import tpu as pltpu

LN_EPS = 1e-5  # PyTorch nn.LayerNorm default


def _subgraph_kernel(x_ref, w_ref, b_ref, g_ref, beta_ref, o_ref, *, v_number):
    # x_ref:    (TB*V, F)   TB whole batch elements, flattened over V
    # w_ref:    (F, F)      Linear weight, already transposed to (in, out)
    # b_ref:    (1, F)      Linear bias (f32)
    # g_ref:    (1, F)      LayerNorm gamma (f32)
    # beta_ref: (1, F)      LayerNorm beta (f32)
    # o_ref:    (TB*V, 2F)  output: [:, :F] = per-batch max, [:, F:] = encoded
    rows, feat = x_ref.shape
    tb = rows // v_number

    # Linear: one large MXU matmul per grid step, f32 accumulation.
    h = jnp.dot(x_ref[...], w_ref[...], preferred_element_type=jnp.float32)
    h = h + b_ref[...]                                     # broadcast (1, F)

    # LayerNorm over features (f32 stats, biased variance, eps inside rsqrt).
    mu = jnp.mean(h, axis=-1, keepdims=True)
    d = h - mu
    var = jnp.mean(d * d, axis=-1, keepdims=True)
    hn = d * jax.lax.rsqrt(var + LN_EPS) * g_ref[...] + beta_ref[...]

    # ReLU
    hr = jnp.maximum(hn, 0.0)                              # (TB*V, F), f32

    # Per-batch-element max over the V rows (== F.max_pool1d(kernel_size=V)),
    # broadcast back to every row of its batch element.
    # TODO(synk): if a production V is not a multiple of 8, pad V in the
    # wrapper to avoid the sublane relayout implied by this reshape.
    h3 = hr.reshape(tb, v_number, feat)
    m = jnp.max(h3, axis=1, keepdims=True)                 # (TB, 1, F)
    m_rows = jnp.broadcast_to(m, (tb, v_number, feat)).reshape(rows, feat)

    m_c = m_rows.astype(o_ref.dtype)
    h_c = hr.astype(o_ref.dtype)
    if feat % 128 == 0:
        # Lane-aligned halves: two full-width, unmasked stores.
        o_ref[:, :feat] = m_c
        o_ref[:, feat:] = h_c
    else:
        # Sub-128 feature width: build the concat in registers (XLU) and issue
        # ONE lane-dense store instead of two masked half-lane stores.
        o_ref[...] = jnp.concatenate([m_c, h_c], axis=-1)


def _round_up(x, m):
    return ((x + m - 1) // m) * m


def _const_spec(block_shape):
    """BlockSpec for a constant-index operand; single-buffered when supported."""
    idx = lambda i: (0,) * len(block_shape)
    if hasattr(pl, "Buffered"):
        try:
            return pl.BlockSpec(block_shape, idx, pipeline_mode=pl.Buffered(1))
        except TypeError:
            pass
    return pl.BlockSpec(block_shape, idx)


def _choose_batch_block(batch, v_number, feat, in_item, out_item, unit):
    """Batch elements per grid step, byte-budgeted.

    Target ~3 MiB of streamed HBM bytes (x read + [max|h] write) per step so
    DMAs are MiB-scale (measured ~85%+ of HBM roofline vs ~60% for sub-256 KiB
    blocks) and the ~0.35 us per-step overhead is amortized.  Then nudge the
    grid to an even step count, and at least 4 steps where the batch allows,
    so v7x's two TensorCores both get work and the pipeline can overlap.
    """
    bytes_per_be = v_number * feat * (in_item + 2 * out_item)
    target = 3 << 20
    tb = max(unit, (target // max(bytes_per_be, 1)) // unit * unit)
    tb = min(tb, _round_up(batch, unit))

    for _ in range(2):
        steps = -(-batch // tb)
        desired = steps
        if batch >= 4 * unit:
            desired = max(desired, 4)
        elif batch >= 2 * unit:
            desired = max(desired, 2)
        if desired > 1 and desired % 2 == 1:
            desired += 1
        if desired == steps:
            break
        tb = max(unit, _round_up(-(-batch // desired), unit))
    return tb


def subgraph_layer(x, w, b, gamma, beta, *, out_dtype=None, batch_block=None):
    """VectorNet SubGraphLayer forward.

    x: [B, V, F]; consumed in its own dtype (pass bfloat16 x to halve HBM read
       traffic -- no wrapper-side cast / extra HBM pass is performed).
    w: [F, F] PyTorch-style (out, in); b/gamma/beta: [F].
    out_dtype: defaults to x.dtype (bf16 output halves the dominant write
       stream); matmul accumulation and LayerNorm statistics stay in f32.
    Returns [B, V, 2F] in out_dtype.
    """
    B, V, F = x.shape
    in_dtype = jnp.dtype(x.dtype)
    odt = jnp.dtype(out_dtype) if out_dtype is not None else in_dtype
    in_item, out_item = in_dtype.itemsize, odt.itemsize

    w_t = jnp.asarray(w, in_dtype).T                 # (in, out) for x @ W^T
    b2 = jnp.asarray(b, jnp.float32).reshape(1, F)
    g2 = jnp.asarray(gamma, jnp.float32).reshape(1, F)
    be2 = jnp.asarray(beta, jnp.float32).reshape(1, F)

    # Sublane requirement on the block's leading (row) dim: 8 for f32 blocks,
    # 16 when any streamed block is 2-byte.  unit = smallest tb with
    # (tb * V) % sub == 0, so every block (incl. a padded tail) is legal.
    sub = max(8, 32 // max(1, min(in_item, out_item)))
    unit = sub // math.gcd(V, sub)

    tb = batch_block if batch_block is not None else _choose_batch_block(
        B, V, F, in_item, out_item, unit)
    tb = max(unit, _round_up(int(tb), unit))

    B_pad = _round_up(B, tb)
    rows = tb * V
    grid = (B_pad // tb,)

    x2 = x.reshape(B * V, F)
    if B_pad != B:
        x2 = jnp.pad(x2, ((0, (B_pad - B) * V), (0, 0)))

    # Double-buffered streaming blocks + (conservatively double-counted)
    # resident params, plus margin; capped under v7x's 64 MiB physical VMEM.
    need = 2 * rows * F * (in_item + 2 * out_item) + 2 * F * F * in_item + 4 * F * 4
    vmem_limit = int(min(max(need + (4 << 20), 16 << 20), 48 << 20))

    out_flat = pl.pallas_call(
        partial(_subgraph_kernel, v_number=V),
        out_shape=jax.ShapeDtypeStruct((B_pad * V, 2 * F), odt),
        grid_spec=pltpu.PrefetchScalarGridSpec(
            num_scalar_prefetch=0,
            grid=grid,
            in_specs=[
                pl.BlockSpec((rows, F), lambda i: (i, 0)),   # x: streamed
                _const_spec((F, F)),                         # W^T: VMEM-resident
                _const_spec((1, F)),                         # bias
                _const_spec((1, F)),                         # gamma
                _const_spec((1, F)),                         # beta
            ],
            out_specs=pl.BlockSpec((rows, 2 * F), lambda i: (i, 0)),
        ),
        compiler_params=pltpu.CompilerParams(
            dimension_semantics=("parallel",),
            vmem_limit_bytes=vmem_limit),
    )(x2, w_t, b2, g2, be2)

    y = out_flat.reshape(B_pad, V, 2 * F)
    return y if B_pad == B else y[:B]


def subgraph_layer_ref(x, w, b, gamma, beta):
    """Pure-JAX reference mirroring the PyTorch forward (f32)."""
    h = x @ w.T + b
    mu = jnp.mean(h, axis=-1, keepdims=True)
    var = jnp.mean((h - mu) ** 2, axis=-1, keepdims=True)
    hn = (h - mu) / jnp.sqrt(var + LN_EPS) * gamma + beta
    hr = jnp.maximum(hn, 0.0)
    m = jnp.max(hr, axis=1, keepdims=True)
    mb = jnp.broadcast_to(m, hr.shape)
    return jnp.concatenate([mb, hr], axis=-1)


if __name__ == "__main__":
    B, V, F = 2, 8, 32  # batch, vNumber, feature_length

    key = jax.random.PRNGKey(0)
    kx, kw, kb, kg, kbe = jax.random.split(key, 5)

    # Quantize x / w to bf16-representable values (kept in f32) so the f32 and
    # bf16 I/O paths agree to ~f32 rounding regardless of MXU precision mode.
    x = jax.random.normal(kx, (B, V, F), jnp.float32)
    x = x.astype(jnp.bfloat16).astype(jnp.float32)
    w = (jax.random.normal(kw, (F, F), jnp.float32) * 0.1)       # (out, in)
    w = w.astype(jnp.bfloat16).astype(jnp.float32)
    b = jax.random.normal(kb, (F,), jnp.float32) * 0.1
    gamma = 1.0 + 0.05 * jax.random.normal(kg, (F,), jnp.float32)
    beta = 0.05 * jax.random.normal(kbe, (F,), jnp.float32)

    y_ref = subgraph_layer_ref(x, w, b, gamma, beta)

    # f32 in / f32 out path.
    y = subgraph_layer(x, w, b, gamma, beta)
    jax.block_until_ready(y)
    assert y.shape == (B, V, 2 * F), y.shape
    assert jnp.allclose(y, y_ref, atol=5e-3, rtol=5e-3), float(
        jnp.max(jnp.abs(y - y_ref)))

    # bf16 in / bf16 out path (producer already emits bf16; no wrapper cast).
    y_bf = subgraph_layer(x.astype(jnp.bfloat16), w, b, gamma, beta)
    jax.block_until_ready(y_bf)
    assert y_bf.shape == (B, V, 2 * F) and y_bf.dtype == jnp.bfloat16
    assert jnp.allclose(y_bf.astype(jnp.float32), y_ref, atol=3e-2, rtol=3e-2), float(
        jnp.max(jnp.abs(y_bf.astype(jnp.float32) - y_ref)))

    # Odd batch exercising the padded-tail path (no assert/divisibility trap).
    B2 = 3
    x3 = jax.random.normal(kx, (B2, V, F), jnp.float32)
    x3 = x3.astype(jnp.bfloat16).astype(jnp.float32)
    y3 = subgraph_layer(x3, w, b, gamma, beta, batch_block=2)
    jax.block_until_ready(y3)
    y3_ref = subgraph_layer_ref(x3, w, b, gamma, beta)
    assert y3.shape == (B2, V, 2 * F), y3.shape
    assert jnp.allclose(y3, y3_ref, atol=5e-3, rtol=5e-3), float(
        jnp.max(jnp.abs(y3 - y3_ref)))

    print("KERNEL_OK")
</pallas_src>

<mosaic_0001>
module attributes {stable_mosaic.version = 11 : i64} {
  func.func @_subgraph_kernel(%arg0: i32, %arg1: memref<8x32xf32, #tpu.memory_space<vmem>>, %arg2: memref<32x32xf32, #tpu.memory_space<vmem>>, %arg3: memref<1x32xf32, #tpu.memory_space<vmem>>, %arg4: memref<1x32xf32, #tpu.memory_space<vmem>>, %arg5: memref<1x32xf32, #tpu.memory_space<vmem>>, %arg6: memref<8x64xf32, #tpu.memory_space<vmem>>) attributes {dimension_semantics = [#tpu.dimension_semantics<parallel>], iteration_bounds = array<i64: 2>, scalar_prefetch = 0 : i64, scratch_operands = 0 : i64, tpu.core_type = #tpu.core_type<tc>, window_params = [{transform_indices = @transform_0, window_bounds = array<i64: 8, 32>}, {pipeline_mode = #tpu.pipeline_mode<synchronous>, transform_indices = @transform_1, window_bounds = array<i64: 32, 32>}, {pipeline_mode = #tpu.pipeline_mode<synchronous>, transform_indices = @transform_2, window_bounds = array<i64: 1, 32>}, {pipeline_mode = #tpu.pipeline_mode<synchronous>, transform_indices = @transform_3, window_bounds = array<i64: 1, 32>}, {pipeline_mode = #tpu.pipeline_mode<synchronous>, transform_indices = @transform_4, window_bounds = array<i64: 1, 32>}, {transform_indices = @transform_5, window_bounds = array<i64: 8, 64>}]} {
    %c0 = arith.constant 0 : index
    %c0_0 = arith.constant 0 : index
    %0 = vector.load %arg1[%c0, %c0_0] : memref<8x32xf32, #tpu.memory_space<vmem>>, vector<8x32xf32>
    %c0_1 = arith.constant 0 : index
    %c0_2 = arith.constant 0 : index
    %1 = vector.load %arg2[%c0_1, %c0_2] : memref<32x32xf32, #tpu.memory_space<vmem>>, vector<32x32xf32>
    %cst = arith.constant dense<0.000000e+00> : vector<8x32xf32>
    %2 = tpu.matmul %0, %1, %cst {dimension_numbers = #tpu.dot_dimension_numbers<[1], [0], [0], [1], [0, 0, 1, 1], [], []>} : vector<8x32xf32>, vector<32x32xf32>, vector<8x32xf32> -> vector<8x32xf32>
    %c0_3 = arith.constant 0 : index
    %c0_4 = arith.constant 0 : index
    %3 = vector.load %arg3[%c0_3, %c0_4] : memref<1x32xf32, #tpu.memory_space<vmem>>, vector<1x32xf32>
    %4 = vector.broadcast %3 : vector<1x32xf32> to vector<8x32xf32>
    %5 = arith.addf %2, %4 : vector<8x32xf32>
    %cst_5 = arith.constant dense<0.000000e+00> : vector<8xf32>
    %6 = vector.multi_reduction <add>, %5, %cst_5 [1] : vector<8x32xf32> to vector<8xf32>
    %7 = vector.shape_cast %6 : vector<8xf32> to vector<8x1xf32>
    %cst_6 = arith.constant 3.200000e+01 : f32
    %8 = vector.broadcast %cst_6 : f32 to vector<8x1xf32>
    %9 = arith.divf %7, %8 : vector<8x1xf32>
    %10 = vector.broadcast %9 : vector<8x1xf32> to vector<8x32xf32>
    %11 = arith.subf %5, %10 : vector<8x32xf32>
    %12 = arith.mulf %11, %11 : vector<8x32xf32>
    %cst_7 = arith.constant dense<0.000000e+00> : vector<8xf32>
    %13 = vector.multi_reduction <add>, %12, %cst_7 [1] : vector<8x32xf32> to vector<8xf32>
    %14 = vector.shape_cast %13 : vector<8xf32> to vector<8x1xf32>
    %cst_8 = arith.constant 3.200000e+01 : f32
    %15 = vector.broadcast %cst_8 : f32 to vector<8x1xf32>
    %16 = arith.divf %14, %15 : vector<8x1xf32>
    %cst_9 = arith.constant 9.99999974E-6 : f32
    %17 = vector.broadcast %cst_9 : f32 to vector<8x1xf32>
    %18 = arith.addf %16, %17 : vector<8x1xf32>
    %19 = math.rsqrt %18 : vector<8x1xf32>
    %20 = vector.broadcast %19 : vector<8x1xf32> to vector<8x32xf32>
    %21 = arith.mulf %11, %20 : vector<8x32xf32>
    %c0_10 = arith.constant 0 : index
    %c0_11 = arith.constant 0 : index
    %22 = vector.load %arg4[%c0_10, %c0_11] : memref<1x32xf32, #tpu.memory_space<vmem>>, vector<1x32xf32>
    %23 = vector.broadcast %22 : vector<1x32xf32> to vector<8x32xf32>
    %24 = arith.mulf %21, %23 : vector<8x32xf32>
    %c0_12 = arith.constant 0 : index
    %c0_13 = arith.constant 0 : index
    %25 = vector.load %arg5[%c0_12, %c0_13] : memref<1x32xf32, #tpu.memory_space<vmem>>, vector<1x32xf32>
    %26 = vector.broadcast %25 : vector<1x32xf32> to vector<8x32xf32>
    %27 = arith.addf %24, %26 : vector<8x32xf32>
    %cst_14 = arith.constant 0.000000e+00 : f32
    %28 = vector.broadcast %cst_14 : f32 to vector<8x32xf32>
    %29 = arith.maximumf %27, %28 : vector<8x32xf32>
    %30 = vector.shape_cast %29 : vector<8x32xf32> to vector<1x8x32xf32>
    %cst_15 = arith.constant dense<0xFF800000> : vector<1x32xf32>
    %31 = vector.multi_reduction <maximumf>, %30, %cst_15 [1] : vector<1x8x32xf32> to vector<1x32xf32>
    %32 = vector.shape_cast %31 : vector<1x32xf32> to vector<1x1x32xf32>
    %33 = vector.shape_cast %32 : vector<1x1x32xf32> to vector<1x1x32xf32>
    %34 = vector.broadcast %33 : vector<1x1x32xf32> to vector<1x8x32xf32>
    %35 = vector.shape_cast %34 : vector<1x8x32xf32> to vector<8x32xf32>
    %36 = tpu.concatenate %35, %29 in 1 : vector<8x32xf32>, vector<8x32xf32> -> vector<8x64xf32>
    %c0_16 = arith.constant 0 : index
    %c0_17 = arith.constant 0 : index
    %37 = vector.load %arg6[%c0_16, %c0_17] : memref<8x64xf32, #tpu.memory_space<vmem>>, vector<8x64xf32>
    tpu.vector_store %arg6[%c0_16, %c0_17], %36 {strides = array<i32>} : memref<8x64xf32, #tpu.memory_space<vmem>>, vector<8x64xf32>,
    return
  }
  func.func @transform_0(%arg0: i32) -> (i32, i32) {
    %c0_i32 = arith.constant 0 : i32
    %c0_i32_0 = arith.constant 0 : i32
    return %arg0, %c0_i32 : i32, i32
  }
  func.func @transform_1(%arg0: i32) -> (i32, i32) {
    %c0_i32 = arith.constant 0 : i32
    %c0_i32_0 = arith.constant 0 : i32
    %c0_i32_1 = arith.constant 0 : i32
    return %c0_i32, %c0_i32_0 : i32, i32
  }
  func.func @transform_2(%arg0: i32) -> (i32, i32) {
    %c0_i32 = arith.constant 0 : i32
    %c0_i32_0 = arith.constant 0 : i32
    %c0_i32_1 = arith.constant 0 : i32
    return %c0_i32, %c0_i32_0 : i32, i32
  }
  func.func @transform_3(%arg0: i32) -> (i32, i32) {
    %c0_i32 = arith.constant 0 : i32
    %c0_i32_0 = arith.constant 0 : i32
    %c0_i32_1 = arith.constant 0 : i32
    return %c0_i32, %c0_i32_0 : i32, i32
  }
  func.func @transform_4(%arg0: i32) -> (i32, i32) {
    %c0_i32 = arith.constant 0 : i32
    %c0_i32_0 = arith.constant 0 : i32
    %c0_i32_1 = arith.constant 0 : i32
    return %c0_i32, %c0_i32_0 : i32, i32
  }
  func.func @transform_5(%arg0: i32) -> (i32, i32) {
    %c0_i32 = arith.constant 0 : i32
    %c0_i32_0 = arith.constant 0 : i32
    return %arg0, %c0_i32 : i32, i32
  }
}

</mosaic_0001>

<llo_original>
// kernel: tpu_custom_call.1
$region0: #{tpu_custom_call.1}
  #allocation0 [shape = 'u32[]', space=smem, size = 0x4, offset = 0x4, fixed_abs, tag = 'smem constant byte address 0x4 - core index']
  #allocation1 [shape = 'u32[144,128]{1,0:T(1,128)}', space=vmem, size = 0x12000, scoped, tag = 'internal scratch']
  %s0 = inlined_call_operand.hbm [shape: f32[16,32], index: 0, kind: input, shape index: {}]
  %s1 = inlined_call_operand.hbm [shape: f32[32,32], index: 1, kind: input, shape index: {}]
  %s2 = inlined_call_operand.vmem [shape: f32[1,32], index: 2, kind: input, shape index: {}]
  %s3 = inlined_call_operand.vmem [shape: f32[1,32], index: 3, kind: input, shape index: {}]
  %s4 = inlined_call_operand.vmem [shape: f32[1,32], index: 4, kind: input, shape index: {}]
  %s5 = inlined_call_operand.hbm [shape: f32[16,64], index: 5, kind: output, shape index: {}]
  %s6 = sld [smem:[#allocation0]]
  $region61: #{tpu_custom_call.1} parent=0
    _
  %s8 = ssub.s32 1, %s6
  %s9 = scalar_select 0, %s8, %s6
  $region1: #{tpu_custom_call.1} parent=0
    #allocation2 [shape = 'u8[8192]{0}', space=vmem, size = 0x2000, scoped, tag = 'input window, operand 0']
    #allocation3 [shape = 's32[2]{0}', space=sflag, size = 0x8, scoped, tag = 'scoped memory for tpu_custom_call.1']
    #allocation4 [shape = 's32[2]{0}', space=sflag, size = 0x8, scoped, tag = 'scoped memory for tpu_custom_call.1']
    #allocation5 [shape = 'u8[16384]{0}', space=vmem, size = 0x4000, scoped, tag = 'input window, operand 1, single buffered']
    #allocation6 [shape = 's32[1]{0}', space=sflag, size = 0x4, scoped, tag = 'scoped memory for tpu_custom_call.1']
    #allocation7 [shape = 'u8[8192]{0}', space=vmem, size = 0x2000, scoped, tag = 'output window, operand 0']
    %10 = vsyncpa [#allocation3], 0
    %s11 = scalar_lea.sflag [#allocation3], 1
    %12 = vsyncpa %s11, 0
    %13 = vsyncpa [#allocation6], 0
    %14 = vsyncpa [#allocation4], 0
    %s15 = scalar_lea.sflag [#allocation4], 1
    %16 = vsyncpa %s15, 0
    loop: start=0, step=1, limit=4
    $region2: #{tpu_custom_call.1} parent=1 // loop_pre_header
      _
    $region3: #{tpu_custom_call.1} parent=1 // loop_header
      %s18 = sphi 0, %s22
      %p19 = scmp.ge.s32.totalorder %s18, 4
      %s28 = sphi 0, %s30
      %s31 = sphi 0, %s28
      %s32 = sphi 0, %s31
      %s48 = sphi 0, %s32
      %s52 = sphi 0, %s52
      %s54 = sphi 0, %s52
      %s55 = sphi 0, %s54
      %s69 = sphi 0, %s55
      %s73 = sphi 0, %s73
      %s75 = sphi 0, %s73
      %s76 = sphi 0, %s75
      %s90 = sphi 0, %s76
      %s94 = sphi 0, %s94
      %s96 = sphi 0, %s94
      %s97 = sphi 0, %s96
      %s111 = sphi 0, %s97
      %s115 = sphi 0, %s115
      %s117 = sphi 0, %s115
      %s118 = sphi 0, %s117
      %s132 = sphi 0, %s118
      %s138 = sphi 0, %s140
      %s141 = sphi 0, %s138
      %s142 = sphi 0, %s141
      %s158 = sphi 0, %s142
    $region4: #{tpu_custom_call.1} parent=1 // loop_header_branch
      %21 = sbr.rel (%p19) target = $region8
    $region5: #{tpu_custom_call.1} parent=1 // loop_body
      %s23 = ssub.s32 %s18, 1
      %s24 = ssub.s32 %s18, 2
      %s25 = sadd.s32 %s18, 1
      %s26 = ssub.s32 %s18, %s25
      %p27 = scmp.eq.s32.totalorder %s26, 0
      %s29 = sadd.s32 %s28, 1
      %s30 = scalar_select %p27, %s28, %s29
      %p33 = pneg %p27
      %p34 = scmp.eq.s32.totalorder %s18, 1
      %p35 = por %p33, %p34
      %p36 = scmp.ne.s32.totalorder %s28, %s31
      %p37 = scmp.eq.s32.totalorder %s18, 0
      %p38 = por %p36, %p37
      %p39 = scmp.ne.s32.totalorder %s28, %s31
      %p40 = scmp.eq.s32.totalorder %s23, 1
      %p41 = por %p39, %p40
      %p42 = scmp.ne.s32.totalorder %s31, %s32
      %p43 = scmp.eq.s32.totalorder %s23, 0
      %p44 = por %p42, %p43
      %p45 = scmp.ne.s32.totalorder %s31, %s32
      %p46 = scmp.eq.s32.totalorder %s24, 1
      %p47 = por %p45, %p46
      %p49 = scmp.ne.s32.totalorder %s32, %s48
      %p50 = scmp.eq.s32.totalorder %s24, 0
      %p51 = por %p49, %p50
      %s53 = sadd.s32 %s52, 1
      %p56 = scmp.eq.s32.totalorder %s18, 1
      %p57 = scmp.ne.s32.totalorder %s52, %s54
      %p58 = scmp.eq.s32.totalorder %s18, 0
      %p59 = por %p57, %p58
      %p60 = scmp.ne.s32.totalorder %s52, %s54
      %p61 = scmp.eq.s32.totalorder %s23, 1
      %p62 = por %p60, %p61
      %p63 = scmp.ne.s32.totalorder %s54, %s55
      %p64 = scmp.eq.s32.totalorder %s23, 0
      %p65 = por %p63, %p64
      %p66 = scmp.ne.s32.totalorder %s54, %s55
      %p67 = scmp.eq.s32.totalorder %s24, 1
      %p68 = por %p66, %p67
      %p70 = scmp.ne.s32.totalorder %s55, %s69
      %p71 = scmp.eq.s32.totalorder %s24, 0
      %p72 = por %p70, %p71
      %s74 = sadd.s32 %s73, 1
      %p77 = scmp.eq.s32.totalorder %s18, 1
      %p78 = scmp.ne.s32.totalorder %s73, %s75
      %p79 = scmp.eq.s32.totalorder %s18, 0
      %p80 = por %p78, %p79
      %p81 = scmp.ne.s32.totalorder %s73, %s75
      %p82 = scmp.eq.s32.totalorder %s23, 1
      %p83 = por %p81, %p82
      %p84 = scmp.ne.s32.totalorder %s75, %s76
      %p85 = scmp.eq.s32.totalorder %s23, 0
      %p86 = por %p84, %p85
      %p87 = scmp.ne.s32.totalorder %s75, %s76
      %p88 = scmp.eq.s32.totalorder %s24, 1
      %p89 = por %p87, %p88
      %p91 = scmp.ne.s32.totalorder %s76, %s90
      %p92 = scmp.eq.s32.totalorder %s24, 0
      %p93 = por %p91, %p92
      %s95 = sadd.s32 %s94, 1
      %p98 = scmp.eq.s32.totalorder %s18, 1
      %p99 = scmp.ne.s32.totalorder %s94, %s96
      %p100 = scmp.eq.s32.totalorder %s18, 0
      %p101 = por %p99, %p100
      %p102 = scmp.ne.s32.totalorder %s94, %s96
      %p103 = scmp.eq.s32.totalorder %s23, 1
      %p104 = por %p102, %p103
      %p105 = scmp.ne.s32.totalorder %s96, %s97
      %p106 = scmp.eq.s32.totalorder %s23, 0
      %p107 = por %p105, %p106
      %p108 = scmp.ne.s32.totalorder %s96, %s97
      %p109 = scmp.eq.s32.totalorder %s24, 1
      %p110 = por %p108, %p109
      %p112 = scmp.ne.s32.totalorder %s97, %s111
      %p113 = scmp.eq.s32.totalorder %s24, 0
      %p114 = por %p112, %p113
      %s116 = sadd.s32 %s115, 1
      %p119 = scmp.eq.s32.totalorder %s18, 1
      %p120 = scmp.ne.s32.totalorder %s115, %s117
      %p121 = scmp.eq.s32.totalorder %s18, 0
      %p122 = por %p120, %p121
      %p123 = scmp.ne.s32.totalorder %s115, %s117
      %p124 = scmp.eq.s32.totalorder %s23, 1
      %p125 = por %p123, %p124
      %p126 = scmp.ne.s32.totalorder %s117, %s118
      %p127 = scmp.eq.s32.totalorder %s23, 0
      %p128 = por %p126, %p127
      %p129 = scmp.ne.s32.totalorder %s117, %s118
      %p130 = scmp.eq.s32.totalorder %s24, 1
      %p131 = por %p129, %p130
      %p133 = scmp.ne.s32.totalorder %s118, %s132
      %p134 = scmp.eq.s32.totalorder %s24, 0
      %p135 = por %p133, %p134
      %s136 = ssub.s32 %s18, %s25
      %p137 = scmp.eq.s32.totalorder %s136, 0
      %s139 = sadd.s32 %s138, 1
      %s140 = scalar_select %p137, %s138, %s139
      %p143 = pneg %p137
      %p144 = scmp.eq.s32.totalorder %s18, 1
      %p145 = por %p143, %p144
      %p146 = scmp.ne.s32.totalorder %s138, %s141
      %p147 = scmp.eq.s32.totalorder %s18, 0
      %p148 = por %p146, %p147
      %p149 = scmp.ne.s32.totalorder %s138, %s141
      %p150 = scmp.eq.s32.totalorder %s23, 1
      %p151 = por %p149, %p150
      %p152 = scmp.ne.s32.totalorder %s141, %s142
      %p153 = scmp.eq.s32.totalorder %s23, 0
      %p154 = por %p152, %p153
      %p155 = scmp.ne.s32.totalorder %s141, %s142
      %p156 = scmp.eq.s32.totalorder %s24, 1
      %p157 = por %p155, %p156
      %p159 = scmp.ne.s32.totalorder %s142, %s158
      %p160 = scmp.eq.s32.totalorder %s24, 0
      %p161 = por %p159, %p160
      %p162 = scmp.le.s32.totalorder 1, %s18
      %p163 = scmp.lt.s32.totalorder %s18, 3
      %p164 = pnand %p162, %p163
      %p165 = pneg %p164
      // Predicated region
      $region9: #{tpu_custom_call.1} parent=5 // pred_check
        _
      $region10: #{tpu_custom_call.1} parent=5 // pred_check_branch
        %167 = sbr.rel (%p164) target = $region12
      $region11: #{tpu_custom_call.1} parent=5 // pred_region
        %s168 = ssub.s32 %s18, 1
        // Predicated region
        $region13: #{tpu_custom_call.1} parent=11 // pred_check
          %p169 = pneg %p65
        $region14: #{tpu_custom_call.1} parent=11 // pred_check_branch
          %171 = sbr.rel (%p169) target = $region16
        $region15: #{tpu_custom_call.1} parent=11 // pred_region
          %s173 = ssub.s32 512, 512
          %174 = vsyncadd [#allocation6], %s173
          %s175 = sshll.u32 [#allocation5], 4
          %s176 = int_to_ptr.vmem [resolvable:$true] %s175
          %181 = dma.hbm_to_vmem [thread:$0]  %s1, 512, %s176, [#allocation6], 128, 128, 8
        $region16: #{tpu_custom_call.1} parent=11 // pred_fallthru
          _
        // Predicated region
        $region17: #{tpu_custom_call.1} parent=11 // pred_check
          %p182 = pneg %p86
        $region18: #{tpu_custom_call.1} parent=11 // pred_check_branch
          %184 = sbr.rel (%p182) target = $region20
        $region19: #{tpu_custom_call.1} parent=11 // pred_region
          _
        $region20: #{tpu_custom_call.1} parent=11 // pred_fallthru
          _
        // Predicated region
        $region21: #{tpu_custom_call.1} parent=11 // pred_check
          %p185 = pneg %p107
        $region22: #{tpu_custom_call.1} parent=11 // pred_check_branch
          %187 = sbr.rel (%p185) target = $region24
        $region23: #{tpu_custom_call.1} parent=11 // pred_region
          _
        $region24: #{tpu_custom_call.1} parent=11 // pred_fallthru
          _
        // Predicated region
        $region25: #{tpu_custom_call.1} parent=11 // pred_check
          %p188 = pneg %p128
        $region26: #{tpu_custom_call.1} parent=11 // pred_check_branch
          %190 = sbr.rel (%p188) target = $region28
        $region27: #{tpu_custom_call.1} parent=11 // pred_region
          _
        $region28: #{tpu_custom_call.1} parent=11 // pred_fallthru
          _
      $region12: #{tpu_custom_call.1} parent=5 // pred_fallthru
        _
      %p191 = scmp.lt.s32.totalorder %s18, 2
      // Predicated region
      $region29: #{tpu_custom_call.1} parent=5 // pred_check
        %p192 = pneg %p191
      $region30: #{tpu_custom_call.1} parent=5 // pred_check_branch
        %194 = sbr.rel (%p192) target = $region32
      $region31: #{tpu_custom_call.1} parent=5 // pred_region
        // Predicated region
        $region33: #{tpu_custom_call.1} parent=31 // pred_check
          %p195 = pneg %p38
        $region34: #{tpu_custom_call.1} parent=31 // pred_check_branch
          %197 = sbr.rel (%p195) target = $region36
        $region35: #{tpu_custom_call.1} parent=31 // pred_region
          %s198 = sand.u32 %s28, 1
          %s199 = scalar_lea.sflag [#allocation3], %s198
          %s200 = sand.u32 %s28, 1
          %s201 = smul.addr %s200, 8
          %s202 = scalar_lea.vmem [#allocation2], %s201
          %s204 = ssub.s32 128, 128
          %205 = vsyncadd %s199, %s204
          %s206 = smul.addr %s18, 128
          %s207 = scalar_lea.hbm %s0, %s206
          %s209 = sshll.u32 %s202, 4
          %s210 = int_to_ptr.vmem [resolvable:$true] %s209
          %212 = dma.hbm_to_vmem [thread:$0]  %s207, 128, %s210, %s199
        $region36: #{tpu_custom_call.1} parent=31 // pred_fallthru
          _
      $region32: #{tpu_custom_call.1} parent=5 // pred_fallthru
        _
      %p213 = scmp.le.s32.totalorder 1, %s18
      %p214 = scmp.lt.s32.totalorder %s18, 3
      %p215 = pnand %p213, %p214
      %p216 = pneg %p215
      // Predicated region
      $region37: #{tpu_custom_call.1} parent=5 // pred_check
        _
      $region38: #{tpu_custom_call.1} parent=5 // pred_check_branch
        %218 = sbr.rel (%p215) target = $region40
      $region39: #{tpu_custom_call.1} parent=5 // pred_region
        %s219 = ssub.s32 %s18, 1
        %s220 = sand.u32 %s31, 1
        %s221 = scalar_lea.sflag [#allocation3], %s220
        %s222 = sand.u32 %s31, 1
        %s223 = smul.addr %s222, 8
        %s224 = scalar_lea.vmem [#allocation2], %s223
        // Predicated region
        $region41: #{tpu_custom_call.1} parent=39 // pred_check
          %p225 = pneg %p44
        $region42: #{tpu_custom_call.1} parent=39 // pred_check_branch
          %227 = sbr.rel (%p225) target = $region44
        $region43: #{tpu_custom_call.1} parent=39 // pred_region
          %228 = dma.done %s221, 128
        $region44: #{tpu_custom_call.1} parent=39 // pred_fallthru
          _
        // Predicated region
        $region45: #{tpu_custom_call.1} parent=39 // pred_check
          %p229 = pneg %p65
        $region46: #{tpu_custom_call.1} parent=39 // pred_check_branch
          %231 = sbr.rel (%p229) target = $region48
        $region47: #{tpu_custom_call.1} parent=39 // pred_region
          %232 = dma.done [#allocation6], 512
        $region48: #{tpu_custom_call.1} parent=39 // pred_fallthru
          _
        %s233 = sand.u32 %s31, 1
        %s234 = scalar_lea.sflag [#allocation3], %s233
        %s235 = sand.u32 %s31, 1
        %s236 = smul.addr %s235, 8
        %s237 = scalar_lea.vmem [#allocation2], %s236
        %p238 = pneg %p44
        %p239 = pneg %p41
        %p240 = pneg %p65
        %p241 = pneg %p62
        %p242 = pneg %p86
        %p243 = pneg %p83
        %p244 = pneg %p107
        %p245 = pneg %p104
        %p246 = pneg %p128
        %p247 = pneg %p125
        %p248 = pneg %p154
        %p249 = pneg %p151
        %s250 = sand.u32 %s141, 1
        %s251 = scalar_lea.sflag [#allocation4], %s250
        %s252 = sand.u32 %s141, 1
        %s253 = smul.addr %s252, 8
        %s254 = scalar_lea.vmem [#allocation7], %s253
        %v255 = vld [vmem:[%s224] sm:$0xff]
        %v256 = vld [vmem:[#allocation5] sm:$0xff]
        %v257 = vld [vmem:[#allocation5 + $0x8] sm:$0xff]
        %v258 = vld [vmem:[#allocation5 + $0x10] sm:$0xff]
        %v259 = vld [vmem:[#allocation5 + $0x18] sm:$0xff]
        %v260 = vld [vmem:[%s2] sm:$0x1]
        %v262 = vlaneseq
        %v263 = vshrl.u32 %v262, 7
        %v264 = vsub.s32 0, %v263
        %v265 = vrot.slane %v260, %v264
        %vm267 = vcmask 261120
        %v269 = vsel %vm267, %v255, 0
        %271 = vmatprep.subr.mxu0 0.0
        %272 = vmatpush1.msra.mxu0 0.0
        %273 = vmatprep.subr.mxu0 0.0
        %274 = vmatpush1.msra.mxu0 0.0
        %275 = vmatprep.subr.mxu0 0.0
        %276 = vmatpush1.msra.mxu0 0.0
        %277 = vmatprep.subr.mxu0 0.0
        %278 = vmatpush1.msra.mxu0 0.0
        %279 = vmatprep.subr.mxu0 0.0
        %280 = vmatpush1.msra.mxu0 0.0
        %281 = vmatprep.subr.mxu0 0.0
        %282 = vmatpush1.msra.mxu0 0.0
        %283 = vmatprep.subr.mxu0 0.0
        %284 = vmatpush1.msra.mxu0 0.0
        %285 = vmatprep.subr.mxu0 0.0
        %286 = vmatpush1.msra.mxu0 0.0
        %287 = vmatprep.subr.mxu0 0.0
        %288 = vmatpush1.msra.mxu0 0.0
        %289 = vmatprep.subr.mxu0 0.0
        %290 = vmatpush1.msra.mxu0 0.0
        %291 = vmatprep.subr.mxu0 0.0
        %292 = vmatpush1.msra.mxu0 0.0
        %293 = vmatprep.subr.mxu0 0.0
        %294 = vmatpush1.msra.mxu0 0.0
        %295 = vmatprep.subr.mxu0 0.0
        %296 = vmatpush1.msra.mxu0 %v259
        %297 = vmatprep.subr.mxu0 0.0
        %298 = vmatpush1.msra.mxu0 %v258
        %299 = vmatprep.subr.mxu0 0.0
        %300 = vmatpush1.msra.mxu0 %v257
        %301 = vmatprep.subr.mxu0 0.0
        %302 = vmatpush1.msra.mxu0 %v256
        %303 = vmatprep.subr.mxu0 0.0
        %304 = vmatpush2.msra.mxu0 0.0
        %305 = vmatprep.subr.mxu0 0.0
        %306 = vmatpush2.msra.mxu0 0.0
        %307 = vmatprep.subr.mxu0 0.0
        %308 = vmatpush2.msra.mxu0 0.0
        %309 = vmatprep.subr.mxu0 0.0
        %310 = vmatpush2.msra.mxu0 0.0
        %311 = vmatprep.subr.mxu0 0.0
        %312 = vmatpush2.msra.mxu0 0.0
        %313 = vmatprep.subr.mxu0 0.0
        %314 = vmatpush2.msra.mxu0 0.0
        %315 = vmatprep.subr.mxu0 0.0
        %316 = vmatpush2.msra.mxu0 0.0
        %317 = vmatprep.subr.mxu0 0.0
        %318 = vmatpush2.msra.mxu0 0.0
        %319 = vmatprep.subr.mxu0 0.0
        %320 = vmatpush2.msra.mxu0 0.0
        %321 = vmatprep.subr.mxu0 0.0
        %322 = vmatpush2.msra.mxu0 0.0
        %323 = vmatprep.subr.mxu0 0.0
        %324 = vmatpush2.msra.mxu0 0.0
        %325 = vmatprep.subr.mxu0 0.0
        %326 = vmatpush2.msra.mxu0 0.0
        %327 = vmatprep.subr.mxu0 0.0
        %328 = vmatpush2.msra.mxu0 0.0
        %329 = vmatprep.subr.mxu0 0.0
        %330 = vmatpush2.msra.mxu0 0.0
        %331 = vmatprep.subr.mxu0 0.0
        %332 = vmatpush2.msra.mxu0 0.0
        %333 = vmatprep.subr.mxu0 0.0
        %334 = vmatpush2.msra.mxu0 0.0
        %335 = vmatprep.mubr.f32.mxu0 0.0
        %336 = vmatmul.mubr.f32.gmra.mxu0 %v269
        %v337 = vpop.f32.mrf.mxu0
        %v338 = vadd.f32 %v265, %v337
        %v339 = vpop.f32.mrf.mxu0
        %340 = vdwg.mxu0
        %v341 = vsel %vm267, %v338, 0.0
        %342 = vadd.xlane.f32.xlu0 %v341
        %v343 = vpop.xlane.xlu0 %342
        %v344 = vrcp.pop 32.0
        %v345 = vmul.f32 %v343, %v344
        %v346 = vsub.f32 %v338, %v345
        %v347 = vmul.f32 %v346, %v346
        %v348 = vsel %vm267, %v347, 0.0
        %349 = vadd.xlane.f32.xlu0 %v348
        %v350 = vpop.xlane.xlu0 %349
        %v351 = vmul.f32 %v350, %v344
        %v352 = vadd.f32 %v351, 1e-05
        %v353 = vrsqrt.pop %v352
        %v354 = vmul.f32 %v346, %v353
        %v355 = vld [vmem:[%s3] sm:$0x1]
        %v357 = vlaneseq
        %v358 = vshrl.u32 %v357, 7
        %v359 = vsub.s32 0, %v358
        %v360 = vrot.slane %v355, %v359
        %v362 = vmul.f32 %v354, %v360
        %v363 = vld [vmem:[%s4] sm:$0x1]
        %v365 = vlaneseq
        %v366 = vshrl.u32 %v365, 7
        %v367 = vsub.s32 0, %v366
        %v368 = vrot.slane %v363, %v367
        %v370 = vadd.f32 %v362, %v368
        %v371 = vmax.f32 %v370, 0.0
        %v372 = vsel %vm267, %v371, -inf
        %v373 = vrot.slane %v372, 4
        %v374 = vmax.f32 %v372, %v373
        %v375 = vrot.slane %v374, 2
        %v376 = vmax.f32 %v374, %v375
        %v377 = vrot.slane %v376, 1
        %v378 = vmax.f32 %v376, %v377
        %380 = vrot.lane.b32.xlu0 %v371, 32
        %v381 = vpop.permute.xlu0 %380
        %v383 = vsel %vm267, %v378, %v381
        %vm384 = vcmask 523264
        %385 = vst.msk [vmem:[%s254] sm:$0xff] %vm384, %v383
        %s386 = sand.u32 %s141, 1
        %s387 = scalar_lea.sflag [#allocation4], %s386
        %s388 = sand.u32 %s141, 1
        %s389 = smul.addr %s388, 8
        %s390 = scalar_lea.vmem [#allocation7], %s389
        // Predicated region
        $region49: #{tpu_custom_call.1} parent=39 // pred_check
          %p391 = pneg %p151
        $region50: #{tpu_custom_call.1} parent=39 // pred_check_branch
          %393 = sbr.rel (%p391) target = $region52
        $region51: #{tpu_custom_call.1} parent=39 // pred_region
          %s395 = ssub.s32 128, 128
          %396 = vsyncadd %s387, %s395
          %s397 = smul.addr %s23, 128
          %s398 = scalar_lea.hbm %s5, %s397
          %s400 = sshll.u32 %s390, 4
          %s401 = int_to_ptr.vmem [resolvable:$true] %s400
          %403 = dma.vmem_to_hbm [thread:$0]  %s401, 128, %s398, %s387
        $region52: #{tpu_custom_call.1} parent=39 // pred_fallthru
          _
      $region40: #{tpu_custom_call.1} parent=5 // pred_fallthru
        _
      %p404 = scmp.le.s32.totalorder 2, %s18
      // Predicated region
      $region53: #{tpu_custom_call.1} parent=5 // pred_check
        %p405 = pneg %p404
      $region54: #{tpu_custom_call.1} parent=5 // pred_check_branch
        %407 = sbr.rel (%p405) target = $region56
      $region55: #{tpu_custom_call.1} parent=5 // pred_region
        %s408 = ssub.s32 %s18, 2
        // Predicated region
        $region57: #{tpu_custom_call.1} parent=55 // pred_check
          %p409 = pneg %p157
        $region58: #{tpu_custom_call.1} parent=55 // pred_check_branch
          %411 = sbr.rel (%p409) target = $region60
        $region59: #{tpu_custom_call.1} parent=55 // pred_region
          %s412 = sand.u32 %s142, 1
          %s413 = scalar_lea.sflag [#allocation4], %s412
          %s414 = sand.u32 %s142, 1
          %s415 = smul.addr %s414, 8
          %s416 = scalar_lea.vmem [#allocation7], %s415
          %417 = dma.done %s413, 128
        $region60: #{tpu_custom_call.1} parent=55 // pred_fallthru
          _
      $region56: #{tpu_custom_call.1} parent=5 // pred_fallthru
        _
    $region6: #{tpu_custom_call.1} parent=1 // loop_footer
      %s22 = sadd.s32 1, %s18
    $region7: #{tpu_custom_call.1} parent=1 // loop_footer_branch
      %17 = sbr.rel target = $region3
    $region8: #{tpu_custom_call.1} parent=1 // loop_exit
      _
    %418 = vsyncpa [#allocation3], 1
    %s419 = scalar_lea.sflag [#allocation3], 1
    %420 = vsyncpa %s419, 1
    %421 = vsyncpa [#allocation6], 1
    %422 = vsyncpa [#allocation4], 1
    %s423 = scalar_lea.sflag [#allocation4], 1
    %424 = vsyncpa %s423, 1

</llo_original>
